<compile_context>
chip_gen: v5e
topology: v5e:2x2
jax: 0.10.0
libtpu: 0.0.40
codegen_flags: <defaults>
</compile_context>

<pallas_src>
import jax
import jax.numpy as jnp
from jax.experimental import pallas as pl
from jax.experimental.pallas import tpu as pltpu

HIDDEN_DIM = 64
LANE = 128  # TPU vreg lane width


def self_attention_kernel(x_ref, w_ref, b_ref, o_ref):
    # x_ref block: (b_blk, S, H) for the current batch slice (H un-padded).
    b_blk, seq, h = x_ref.shape
    hp = w_ref.shape[1] // 3          # per-chunk padded output width (128)
    mxu = w_ref.dtype                 # bf16 operands for every MXU matmul

    # ---- fused QKV projection: ONE MXU matmul, bf16 operands, f32 accumulate ---
    # (b_blk*S, H) @ (H, 3*HP) -> (b_blk*S, 3*HP); minor dim unchanged by the
    # reshape so merging (b, s) into sublanes is layout-cheap.
    x2 = x_ref[...].reshape(b_blk * seq, h).astype(mxu)
    qkv = jnp.dot(x2, w_ref[...], preferred_element_type=jnp.float32)
    qkv = qkv + b_ref[...]            # f32 bias; padded lanes of bias are zero

    # static slices at 128-lane multiples -> no cross-vreg lane shuffles
    q = qkv[:, 0 * hp:1 * hp].reshape(b_blk, seq, hp).astype(mxu)
    k = qkv[:, 1 * hp:2 * hp].reshape(b_blk, seq, hp).astype(mxu)
    v = qkv[:, 2 * hp:3 * hp].reshape(b_blk, seq, hp).astype(mxu)

    # ---- attention scores: contract last axes directly (no materialized k.T).
    # Padded lanes of q/k are exact zeros so they contribute nothing.
    # No 1/sqrt(d) scaling — matches the PyTorch module.
    sc = jnp.einsum("bqd,bkd->bqk", q, k,
                    preferred_element_type=jnp.float32)            # (b_blk, S, S)

    # ---- numerically-stable softmax in f32; defer normalization to the output.
    sc = sc - jnp.max(sc, axis=-1, keepdims=True)
    p = jnp.exp(sc)
    denom = jnp.sum(p, axis=-1, keepdims=True)                      # (b_blk, S, 1)

    # ---- weighted sum of values (bf16 MXU operands, f32 accumulation) ----------
    o = jnp.einsum("bqk,bkd->bqd", p.astype(mxu), v,
                   preferred_element_type=jnp.float32)              # (b_blk, S, HP)

    # Normalize S*H output elements (not the S*S prob matrix) with an EXACT
    # reciprocal, and store only the real hidden lanes: an in-kernel masked
    # 64-lane store is far cheaper than a post-kernel full-tensor slice pass.
    o = o[..., :o_ref.shape[-1]] * pl.reciprocal(denom, approx=False)
    o_ref[...] = o.astype(o_ref.dtype)

    # TODO(synk): for long sequences, add flash-style S tiling with an online
    # softmax accumulator (the materialized (S,S) scores hit v7x's 64 MiB VMEM
    # roughly 2x earlier than v5e/v6e).


def _pick_batch_block(B, S):
    # Fill the fused-projection M dim (aim for b_blk*S >= 256, the v6e/v7x MXU
    # width) while keeping at least 2 grid steps when B allows so both v7x
    # TensorCores get work (single-TC v5e/v6e are insensitive to the split).
    b_blk = max(1, min(B, max(1, 256 // max(S, 1))))
    if B > 1:
        b_blk = min(b_blk, -(-B // 2))     # guarantee >= 2 grid steps
    return b_blk


def self_attention(x, wq, bq, wk, bk, wv, bv, *, b_blk=None,
                   mxu_dtype=jnp.bfloat16):
    """x: (B, S, H); w*: (H, H) stored as (in, out); b*: (1, H)."""
    B, S, H = x.shape
    HP = pl.cdiv(H, LANE) * LANE           # per-chunk padded output width
    pad = HP - H

    def pad_out(w):   # (H, H) -> (H, HP): pad ONLY the output dim (contraction stays H)
        return jnp.pad(w, ((0, 0), (0, pad)))

    def pad_bias(b):  # (1, H) -> (1, HP)
        return jnp.pad(b, ((0, 0), (0, pad)))

    # Fused projection parameters.  Weight cast to bf16 once (halves weight DMA);
    # bias stays f32 and is added to the f32 accumulator.
    w_qkv = jnp.concatenate([pad_out(wq), pad_out(wk), pad_out(wv)],
                            axis=1).astype(mxu_dtype)                # (H, 3*HP)
    b_qkv = jnp.concatenate([pad_bias(bq), pad_bias(bk), pad_bias(bv)],
                            axis=1).astype(jnp.float32)              # (1, 3*HP)

    if b_blk is None:
        b_blk = _pick_batch_block(B, S)
    b_blk = max(1, min(b_blk, B))
    grid = pl.cdiv(B, b_blk)   # ragged last block is masked by Pallas (batch rows
                               # never mix, so garbage rows stay contained)

    # NOTE: weight/bias could be single-buffered (pipeline_mode=pl.Buffered(1)) to
    # save ~100 KiB of VMEM on v7x; omitted here since headroom is ample.
    return pl.pallas_call(
        self_attention_kernel,
        out_shape=jax.ShapeDtypeStruct((B, S, H), x.dtype),
        grid_spec=pltpu.PrefetchScalarGridSpec(
            num_scalar_prefetch=0,
            grid=(grid,),
            in_specs=[
                pl.BlockSpec((b_blk, S, H), lambda i: (i, 0, 0)),    # x (un-padded)
                pl.BlockSpec((H, 3 * HP), lambda i: (0, 0)),         # fused W_qkv
                pl.BlockSpec((1, 3 * HP), lambda i: (0, 0)),         # fused b_qkv
            ],
            out_specs=pl.BlockSpec((b_blk, S, H), lambda i: (i, 0, 0)),
        ),
        compiler_params=pltpu.CompilerParams(
            dimension_semantics=("parallel",),   # batch blocks shard across v7x TCs
        ),
    )(x, w_qkv, b_qkv)


def reference(x, wq, bq, wk, bk, wv, bv, *, mxu_dtype=jnp.bfloat16):
    """Pure-JAX reference with the SAME dtype policy as the kernel:
    bf16 MXU operands, f32 accumulation, f32 softmax.  This keeps the comparison
    tight while the underlying math matches the PyTorch module's forward pass."""
    B, S, H = x.shape

    def mm(a, b):
        return jnp.dot(a.astype(mxu_dtype), b.astype(mxu_dtype),
                       preferred_element_type=jnp.float32)

    x2 = x.reshape(B * S, H)
    q = (mm(x2, wq) + bq).reshape(B, S, H)
    k = (mm(x2, wk) + bk).reshape(B, S, H)
    v = (mm(x2, wv) + bv).reshape(B, S, H)

    sc = jnp.einsum("bqd,bkd->bqk", q.astype(mxu_dtype), k.astype(mxu_dtype),
                    preferred_element_type=jnp.float32)
    sc = sc - jnp.max(sc, axis=-1, keepdims=True)
    p = jnp.exp(sc)
    denom = jnp.sum(p, axis=-1, keepdims=True)
    o = jnp.einsum("bqk,bkd->bqd", p.astype(mxu_dtype), v.astype(mxu_dtype),
                   preferred_element_type=jnp.float32)
    return o / denom


if __name__ == "__main__":
    B, S, H = 8, 8, HIDDEN_DIM
    key = jax.random.PRNGKey(0)
    kx, kq, kbq, kk, kbk, kv, kbv = jax.random.split(key, 7)

    bound = 1.0 / jnp.sqrt(H)  # mimic nn.Linear default uniform init range
    x = jax.random.normal(kx, (B, S, H), dtype=jnp.float32)
    # weights stored as (in, out) = W^T of the PyTorch (out, in) weight
    wq = jax.random.uniform(kq, (H, H), jnp.float32, -bound, bound)
    bq = jax.random.uniform(kbq, (1, H), jnp.float32, -bound, bound)
    wk = jax.random.uniform(kk, (H, H), jnp.float32, -bound, bound)
    bk = jax.random.uniform(kbk, (1, H), jnp.float32, -bound, bound)
    wv = jax.random.uniform(kv, (H, H), jnp.float32, -bound, bound)
    bv = jax.random.uniform(kbv, (1, H), jnp.float32, -bound, bound)

    out = self_attention(x, wq, bq, wk, bk, wv, bv)     # b_blk=4 -> grid=(2,)
    out = jax.block_until_ready(out)

    ref = reference(x, wq, bq, wk, bk, wv, bv)
    assert out.shape == (B, S, H)
    # kernel and reference use identical dtype policy, so tolerance stays tight
    assert jnp.allclose(out, ref, atol=2e-3, rtol=2e-3), "mismatch vs reference"

    print("KERNEL_OK")
</pallas_src>

<mosaic_0001>
module attributes {stable_mosaic.version = 11 : i64} {
  func.func @self_attention_kernel(%arg0: i32, %arg1: memref<4x8x64xf32, #tpu.memory_space<vmem>>, %arg2: memref<64x384xbf16, #tpu.memory_space<vmem>>, %arg3: memref<1x384xf32, #tpu.memory_space<vmem>>, %arg4: memref<4x8x64xf32, #tpu.memory_space<vmem>>) attributes {dimension_semantics = [#tpu.dimension_semantics<parallel>], iteration_bounds = array<i64: 2>, scalar_prefetch = 0 : i64, scratch_operands = 0 : i64, tpu.core_type = #tpu.core_type<tc>, window_params = [{transform_indices = @transform_0, window_bounds = array<i64: 4, 8, 64>}, {pipeline_mode = #tpu.pipeline_mode<synchronous>, transform_indices = @transform_1, window_bounds = array<i64: 64, 384>}, {pipeline_mode = #tpu.pipeline_mode<synchronous>, transform_indices = @transform_2, window_bounds = array<i64: 1, 384>}, {transform_indices = @transform_3, window_bounds = array<i64: 4, 8, 64>}]} {
    %c0 = arith.constant 0 : index
    %c0_0 = arith.constant 0 : index
    %c0_1 = arith.constant 0 : index
    %0 = vector.load %arg1[%c0, %c0_0, %c0_1] : memref<4x8x64xf32, #tpu.memory_space<vmem>>, vector<4x8x64xf32>
    %1 = vector.shape_cast %0 : vector<4x8x64xf32> to vector<32x64xf32>
    %2 = arith.truncf %1 : vector<32x64xf32> to vector<32x64xbf16>
    %c0_2 = arith.constant 0 : index
    %c0_3 = arith.constant 0 : index
    %3 = vector.load %arg2[%c0_2, %c0_3] : memref<64x384xbf16, #tpu.memory_space<vmem>>, vector<64x384xbf16>
    %cst = arith.constant dense<0.000000e+00> : vector<32x384xf32>
    %4 = tpu.matmul %2, %3, %cst {dimension_numbers = #tpu.dot_dimension_numbers<[1], [0], [0], [1], [0, 0, 1, 1], [], []>} : vector<32x64xbf16>, vector<64x384xbf16>, vector<32x384xf32> -> vector<32x384xf32>
    %c0_4 = arith.constant 0 : index
    %c0_5 = arith.constant 0 : index
    %5 = vector.load %arg3[%c0_4, %c0_5] : memref<1x384xf32, #tpu.memory_space<vmem>>, vector<1x384xf32>
    %6 = vector.broadcast %5 : vector<1x384xf32> to vector<32x384xf32>
    %7 = arith.addf %4, %6 : vector<32x384xf32>
    %8 = vector.extract_strided_slice %7 {offsets = [0, 0], sizes = [32, 128], strides = [1, 1]} : vector<32x384xf32> to vector<32x128xf32>
    %9 = vector.shape_cast %8 : vector<32x128xf32> to vector<4x8x128xf32>
    %10 = arith.truncf %9 : vector<4x8x128xf32> to vector<4x8x128xbf16>
    %11 = vector.extract_strided_slice %7 {offsets = [0, 128], sizes = [32, 128], strides = [1, 1]} : vector<32x384xf32> to vector<32x128xf32>
    %12 = vector.shape_cast %11 : vector<32x128xf32> to vector<4x8x128xf32>
    %13 = arith.truncf %12 : vector<4x8x128xf32> to vector<4x8x128xbf16>
    %14 = vector.extract_strided_slice %7 {offsets = [0, 256], sizes = [32, 128], strides = [1, 1]} : vector<32x384xf32> to vector<32x128xf32>
    %15 = vector.shape_cast %14 : vector<32x128xf32> to vector<4x8x128xf32>
    %16 = arith.truncf %15 : vector<4x8x128xf32> to vector<4x8x128xbf16>
    "tpu.trace_start"() <{level = 10 : i32, message = "bqd,bkd->bqk"}> : () -> ()
    %cst_6 = arith.constant dense<0.000000e+00> : vector<4x8x8xf32>
    %17 = tpu.matmul %10, %13, %cst_6 {dimension_numbers = #tpu.dot_dimension_numbers<[2], [2], [1], [1], [0, 0, 0, 1, 1, 1], [0], [0]>} : vector<4x8x128xbf16>, vector<4x8x128xbf16>, vector<4x8x8xf32> -> vector<4x8x8xf32>
    "tpu.trace_stop"() : () -> ()
    %cst_7 = arith.constant dense<0xFF800000> : vector<4x8xf32>
    %18 = vector.multi_reduction <maximumf>, %17, %cst_7 [2] : vector<4x8x8xf32> to vector<4x8xf32>
    %19 = vector.shape_cast %18 : vector<4x8xf32> to vector<4x8x1xf32>
    %20 = vector.broadcast %19 : vector<4x8x1xf32> to vector<4x8x8xf32>
    %21 = arith.subf %17, %20 : vector<4x8x8xf32>
    %22 = math.exp %21 : vector<4x8x8xf32>
    %cst_8 = arith.constant dense<0.000000e+00> : vector<4x8xf32>
    %23 = vector.multi_reduction <add>, %22, %cst_8 [2] : vector<4x8x8xf32> to vector<4x8xf32>
    %24 = vector.shape_cast %23 : vector<4x8xf32> to vector<4x8x1xf32>
    %25 = arith.truncf %22 : vector<4x8x8xf32> to vector<4x8x8xbf16>
    "tpu.trace_start"() <{level = 10 : i32, message = "bqk,bkd->bqd"}> : () -> ()
    %cst_9 = arith.constant dense<0.000000e+00> : vector<4x8x128xf32>
    %26 = tpu.matmul %25, %16, %cst_9 {dimension_numbers = #tpu.dot_dimension_numbers<[2], [1], [1], [2], [0, 0, 0, 1, 1, 2], [0], [0]>} : vector<4x8x8xbf16>, vector<4x8x128xbf16>, vector<4x8x128xf32> -> vector<4x8x128xf32>
    "tpu.trace_stop"() : () -> ()
    %27 = vector.extract_strided_slice %26 {offsets = [0, 0, 0], sizes = [4, 8, 64], strides = [1, 1, 1]} : vector<4x8x128xf32> to vector<4x8x64xf32>
    %28 = tpu.reciprocal %24 : vector<4x8x1xf32> -> vector<4x8x1xf32>
    %29 = vector.broadcast %28 : vector<4x8x1xf32> to vector<4x8x64xf32>
    %30 = arith.mulf %27, %29 : vector<4x8x64xf32>
    %c0_10 = arith.constant 0 : index
    %c0_11 = arith.constant 0 : index
    %c0_12 = arith.constant 0 : index
    %31 = vector.load %arg4[%c0_10, %c0_11, %c0_12] : memref<4x8x64xf32, #tpu.memory_space<vmem>>, vector<4x8x64xf32>
    tpu.vector_store %arg4[%c0_10, %c0_11, %c0_12], %30 {strides = array<i32>} : memref<4x8x64xf32, #tpu.memory_space<vmem>>, vector<4x8x64xf32>,
    return
  }
  func.func @transform_0(%arg0: i32) -> (i32, i32, i32) {
    %c0_i32 = arith.constant 0 : i32
    %c0_i32_0 = arith.constant 0 : i32
    %c0_i32_1 = arith.constant 0 : i32
    return %arg0, %c0_i32, %c0_i32_0 : i32, i32, i32
  }
  func.func @transform_1(%arg0: i32) -> (i32, i32) {
    %c0_i32 = arith.constant 0 : i32
    %c0_i32_0 = arith.constant 0 : i32
    %c0_i32_1 = arith.constant 0 : i32
    return %c0_i32, %c0_i32_0 : i32, i32
  }
  func.func @transform_2(%arg0: i32) -> (i32, i32) {
    %c0_i32 = arith.constant 0 : i32
    %c0_i32_0 = arith.constant 0 : i32
    %c0_i32_1 = arith.constant 0 : i32
    return %c0_i32, %c0_i32_0 : i32, i32
  }
  func.func @transform_3(%arg0: i32) -> (i32, i32, i32) {
    %c0_i32 = arith.constant 0 : i32
    %c0_i32_0 = arith.constant 0 : i32
    %c0_i32_1 = arith.constant 0 : i32
    return %arg0, %c0_i32, %c0_i32_0 : i32, i32, i32
  }
}

</mosaic_0001>

<llo_original>
// kernel: tpu_custom_call.1
$region0: #{tpu_custom_call.1}
  #allocation0 [shape = 'u32[]', space=smem, size = 0x4, offset = 0x4, fixed_abs, tag = 'smem constant byte address 0x4 - core index']
  #allocation1 [shape = 'u32[72,128]{1,0:T(1,128)}', space=vmem, size = 0x9000, scoped, tag = 'internal scratch']
  %s0 = inlined_call_operand.hbm [shape: f32[8,8,64], index: 0, kind: input, shape index: {}]
  %s1 = inlined_call_operand.hbm [shape: bf16[64,384], index: 1, kind: input, shape index: {}]
  %s2 = inlined_call_operand.hbm [shape: f32[1,384], index: 2, kind: input, shape index: {}]
  %s3 = inlined_call_operand.hbm [shape: f32[8,8,64], index: 3, kind: output, shape index: {}]
  %s4 = sld [smem:[#allocation0]]
  $region57: #{tpu_custom_call.1} parent=0
    _
  %s6 = ssub.s32 1, %s4
  %s7 = scalar_select 0, %s6, %s4
  $region1: #{tpu_custom_call.1} parent=0
    #allocation2 [shape = 'u8[32768]{0}', space=vmem, size = 0x8000, scoped, tag = 'input window, operand 0']
    #allocation3 [shape = 's32[2]{0}', space=sflag, size = 0x8, scoped, tag = 'scoped memory for tpu_custom_call.1']
    #allocation4 [shape = 's32[2]{0}', space=sflag, size = 0x8, scoped, tag = 'scoped memory for tpu_custom_call.1']
    #allocation5 [shape = 'u8[49152]{0}', space=vmem, size = 0xc000, scoped, tag = 'input window, operand 1, single buffered']
    #allocation6 [shape = 's32[1]{0}', space=sflag, size = 0x4, scoped, tag = 'scoped memory for tpu_custom_call.1']
    #allocation7 [shape = 'u8[1536]{0}', space=vmem, size = 0x800, scoped, tag = 'input window, operand 2, single buffered']
    #allocation8 [shape = 'u8[32768]{0}', space=vmem, size = 0x8000, scoped, tag = 'output window, operand 0']
    %8 = vsyncpa [#allocation3], 0
    %s9 = scalar_lea.sflag [#allocation3], 1
    %10 = vsyncpa %s9, 0
    %11 = vsyncpa [#allocation6], 0
    %12 = vsyncpa [#allocation4], 0
    %s13 = scalar_lea.sflag [#allocation4], 1
    %14 = vsyncpa %s13, 0
    loop: start=0, step=1, limit=4
    $region2: #{tpu_custom_call.1} parent=1 // loop_pre_header
      _
    $region3: #{tpu_custom_call.1} parent=1 // loop_header
      %s16 = sphi 0, %s20
      %p17 = scmp.ge.s32.totalorder %s16, 4
      %s26 = sphi 0, %s28
      %s29 = sphi 0, %s26
      %s30 = sphi 0, %s29
      %s46 = sphi 0, %s30
      %s50 = sphi 0, %s50
      %s52 = sphi 0, %s50
      %s53 = sphi 0, %s52
      %s67 = sphi 0, %s53
      %s71 = sphi 0, %s71
      %s73 = sphi 0, %s71
      %s74 = sphi 0, %s73
      %s88 = sphi 0, %s74
      %s94 = sphi 0, %s96
      %s97 = sphi 0, %s94
      %s98 = sphi 0, %s97
      %s114 = sphi 0, %s98
    $region4: #{tpu_custom_call.1} parent=1 // loop_header_branch
      %19 = sbr.rel (%p17) target = $region8
    $region5: #{tpu_custom_call.1} parent=1 // loop_body
      %s21 = ssub.s32 %s16, 1
      %s22 = ssub.s32 %s16, 2
      %s23 = sadd.s32 %s16, 1
      %s24 = ssub.s32 %s16, %s23
      %p25 = scmp.eq.s32.totalorder %s24, 0
      %s27 = sadd.s32 %s26, 1
      %s28 = scalar_select %p25, %s26, %s27
      %p31 = pneg %p25
      %p32 = scmp.eq.s32.totalorder %s16, 1
      %p33 = por %p31, %p32
      %p34 = scmp.ne.s32.totalorder %s26, %s29
      %p35 = scmp.eq.s32.totalorder %s16, 0
      %p36 = por %p34, %p35
      %p37 = scmp.ne.s32.totalorder %s26, %s29
      %p38 = scmp.eq.s32.totalorder %s21, 1
      %p39 = por %p37, %p38
      %p40 = scmp.ne.s32.totalorder %s29, %s30
      %p41 = scmp.eq.s32.totalorder %s21, 0
      %p42 = por %p40, %p41
      %p43 = scmp.ne.s32.totalorder %s29, %s30
      %p44 = scmp.eq.s32.totalorder %s22, 1
      %p45 = por %p43, %p44
      %p47 = scmp.ne.s32.totalorder %s30, %s46
      %p48 = scmp.eq.s32.totalorder %s22, 0
      %p49 = por %p47, %p48
      %s51 = sadd.s32 %s50, 1
      %p54 = scmp.eq.s32.totalorder %s16, 1
      %p55 = scmp.ne.s32.totalorder %s50, %s52
      %p56 = scmp.eq.s32.totalorder %s16, 0
      %p57 = por %p55, %p56
      %p58 = scmp.ne.s32.totalorder %s50, %s52
      %p59 = scmp.eq.s32.totalorder %s21, 1
      %p60 = por %p58, %p59
      %p61 = scmp.ne.s32.totalorder %s52, %s53
      %p62 = scmp.eq.s32.totalorder %s21, 0
      %p63 = por %p61, %p62
      %p64 = scmp.ne.s32.totalorder %s52, %s53
      %p65 = scmp.eq.s32.totalorder %s22, 1
      %p66 = por %p64, %p65
      %p68 = scmp.ne.s32.totalorder %s53, %s67
      %p69 = scmp.eq.s32.totalorder %s22, 0
      %p70 = por %p68, %p69
      %s72 = sadd.s32 %s71, 1
      %p75 = scmp.eq.s32.totalorder %s16, 1
      %p76 = scmp.ne.s32.totalorder %s71, %s73
      %p77 = scmp.eq.s32.totalorder %s16, 0
      %p78 = por %p76, %p77
      %p79 = scmp.ne.s32.totalorder %s71, %s73
      %p80 = scmp.eq.s32.totalorder %s21, 1
      %p81 = por %p79, %p80
      %p82 = scmp.ne.s32.totalorder %s73, %s74
      %p83 = scmp.eq.s32.totalorder %s21, 0
      %p84 = por %p82, %p83
      %p85 = scmp.ne.s32.totalorder %s73, %s74
      %p86 = scmp.eq.s32.totalorder %s22, 1
      %p87 = por %p85, %p86
      %p89 = scmp.ne.s32.totalorder %s74, %s88
      %p90 = scmp.eq.s32.totalorder %s22, 0
      %p91 = por %p89, %p90
      %s92 = ssub.s32 %s16, %s23
      %p93 = scmp.eq.s32.totalorder %s92, 0
      %s95 = sadd.s32 %s94, 1
      %s96 = scalar_select %p93, %s94, %s95
      %p99 = pneg %p93
      %p100 = scmp.eq.s32.totalorder %s16, 1
      %p101 = por %p99, %p100
      %p102 = scmp.ne.s32.totalorder %s94, %s97
      %p103 = scmp.eq.s32.totalorder %s16, 0
      %p104 = por %p102, %p103
      %p105 = scmp.ne.s32.totalorder %s94, %s97
      %p106 = scmp.eq.s32.totalorder %s21, 1
      %p107 = por %p105, %p106
      %p108 = scmp.ne.s32.totalorder %s97, %s98
      %p109 = scmp.eq.s32.totalorder %s21, 0
      %p110 = por %p108, %p109
      %p111 = scmp.ne.s32.totalorder %s97, %s98
      %p112 = scmp.eq.s32.totalorder %s22, 1
      %p113 = por %p111, %p112
      %p115 = scmp.ne.s32.totalorder %s98, %s114
      %p116 = scmp.eq.s32.totalorder %s22, 0
      %p117 = por %p115, %p116
      %p118 = scmp.le.s32.totalorder 1, %s16
      %p119 = scmp.lt.s32.totalorder %s16, 3
      %p120 = pnand %p118, %p119
      %p121 = pneg %p120
      // Predicated region
      $region9: #{tpu_custom_call.1} parent=5 // pred_check
        _
      $region10: #{tpu_custom_call.1} parent=5 // pred_check_branch
        %123 = sbr.rel (%p120) target = $region12
      $region11: #{tpu_custom_call.1} parent=5 // pred_region
        %s124 = ssub.s32 %s16, 1
        // Predicated region
        $region13: #{tpu_custom_call.1} parent=11 // pred_check
          %p125 = pneg %p63
        $region14: #{tpu_custom_call.1} parent=11 // pred_check_branch
          %127 = sbr.rel (%p125) target = $region16
        $region15: #{tpu_custom_call.1} parent=11 // pred_region
          %129 = vsyncadd [#allocation6], 0
          %s130 = sshll.u32 %s1, 4
          %s131 = int_to_ptr.hbm [resolvable:$true] %s130
          %s132 = sshll.u32 [#allocation5], 4
          %s133 = int_to_ptr.vmem [resolvable:$true] %s132
          %138 = dma.hbm_to_vmem [thread:$0]  %s131, 1536, %s133, [#allocation6], 192, 192, 12
        $region16: #{tpu_custom_call.1} parent=11 // pred_fallthru
          _
        // Predicated region
        $region17: #{tpu_custom_call.1} parent=11 // pred_check
          %p139 = pneg %p84
        $region18: #{tpu_custom_call.1} parent=11 // pred_check_branch
          %141 = sbr.rel (%p139) target = $region20
        $region19: #{tpu_custom_call.1} parent=11 // pred_region
          %143 = vsyncadd [#allocation6], 0
          %s145 = sshll.u32 %s2, 4
          %s146 = int_to_ptr.hbm [resolvable:$true] %s145
          %s147 = sshll.u32 [#allocation7], 4
          %s148 = int_to_ptr.vmem [resolvable:$true] %s147
          %150 = dma.hbm_to_vmem [thread:$0]  %s146, 48, %s148, [#allocation6]
        $region20: #{tpu_custom_call.1} parent=11 // pred_fallthru
          _
      $region12: #{tpu_custom_call.1} parent=5 // pred_fallthru
        _
      %p151 = scmp.lt.s32.totalorder %s16, 2
      // Predicated region
      $region21: #{tpu_custom_call.1} parent=5 // pred_check
        %p152 = pneg %p151
      $region22: #{tpu_custom_call.1} parent=5 // pred_check_branch
        %154 = sbr.rel (%p152) target = $region24
      $region23: #{tpu_custom_call.1} parent=5 // pred_region
        // Predicated region
        $region25: #{tpu_custom_call.1} parent=23 // pred_check
          %p155 = pneg %p36
        $region26: #{tpu_custom_call.1} parent=23 // pred_check_branch
          %157 = sbr.rel (%p155) target = $region28
        $region27: #{tpu_custom_call.1} parent=23 // pred_region
          %s158 = sand.u32 %s26, 1
          %s159 = scalar_lea.sflag [#allocation3], %s158
          %s160 = sand.u32 %s26, 1
          %s161 = smul.addr %s160, 32
          %s162 = scalar_lea.vmem [#allocation2], %s161
          %s163 = smul.u32 4, %s16
          %165 = vsyncadd %s159, 0
          %s166 = smul.addr %s163, 8
          %s167 = scalar_lea.hbm %s0, %s166
          %s168 = sshll.u32 %s167, 4
          %s169 = int_to_ptr.hbm [resolvable:$true] %s168
          %s170 = sshll.u32 %s162, 4
          %s171 = int_to_ptr.vmem [resolvable:$true] %s170
          %176 = dma.hbm_to_vmem [thread:$0]  %s169, 512, %s171, %s159, 128, 128, 8
        $region28: #{tpu_custom_call.1} parent=23 // pred_fallthru
          _
      $region24: #{tpu_custom_call.1} parent=5 // pred_fallthru
        _
      %p177 = scmp.le.s32.totalorder 1, %s16
      %p178 = scmp.lt.s32.totalorder %s16, 3
      %p179 = pnand %p177, %p178
      %p180 = pneg %p179
      // Predicated region
      $region29: #{tpu_custom_call.1} parent=5 // pred_check
        _
      $region30: #{tpu_custom_call.1} parent=5 // pred_check_branch
        %182 = sbr.rel (%p179) target = $region32
      $region31: #{tpu_custom_call.1} parent=5 // pred_region
        %s183 = ssub.s32 %s16, 1
        %s184 = sand.u32 %s29, 1
        %s185 = scalar_lea.sflag [#allocation3], %s184
        %s186 = sand.u32 %s29, 1
        %s187 = smul.addr %s186, 32
        %s188 = scalar_lea.vmem [#allocation2], %s187
        // Predicated region
        $region33: #{tpu_custom_call.1} parent=31 // pred_check
          %p189 = pneg %p42
        $region34: #{tpu_custom_call.1} parent=31 // pred_check_branch
          %191 = sbr.rel (%p189) target = $region36
        $region35: #{tpu_custom_call.1} parent=31 // pred_region
          %193 = dma.done %s185, 512
        $region36: #{tpu_custom_call.1} parent=31 // pred_fallthru
          _
        // Predicated region
        $region37: #{tpu_custom_call.1} parent=31 // pred_check
          %p194 = pneg %p63
        $region38: #{tpu_custom_call.1} parent=31 // pred_check_branch
          %196 = sbr.rel (%p194) target = $region40
        $region39: #{tpu_custom_call.1} parent=31 // pred_region
          %198 = dma.done [#allocation6], 1536
        $region40: #{tpu_custom_call.1} parent=31 // pred_fallthru
          _
        // Predicated region
        $region41: #{tpu_custom_call.1} parent=31 // pred_check
          %p199 = pneg %p84
        $region42: #{tpu_custom_call.1} parent=31 // pred_check_branch
          %201 = sbr.rel (%p199) target = $region44
        $region43: #{tpu_custom_call.1} parent=31 // pred_region
          %203 = dma.done [#allocation6], 48
        $region44: #{tpu_custom_call.1} parent=31 // pred_fallthru
          _
        %s204 = sand.u32 %s29, 1
        %s205 = scalar_lea.sflag [#allocation3], %s204
        %s206 = sand.u32 %s29, 1
        %s207 = smul.addr %s206, 32
        %s208 = scalar_lea.vmem [#allocation2], %s207
        %p209 = pneg %p42
        %p210 = pneg %p39
        %p211 = pneg %p63
        %p212 = pneg %p60
        %p213 = pneg %p84
        %p214 = pneg %p81
        %p215 = pneg %p110
        %p216 = pneg %p107
        %s217 = sand.u32 %s97, 1
        %s218 = scalar_lea.sflag [#allocation4], %s217
        %s219 = sand.u32 %s97, 1
        %s220 = smul.addr %s219, 32
        %s221 = scalar_lea.vmem [#allocation8], %s220
        %s222 = smul.u32 4, %s21
        %s223 = smul.u32 4, %s21
        %v225 = vld [vmem:[%s188] sm:$0xff]
        %v226 = vld [vmem:[%s188 + $0x8] sm:$0xff]
        %v227 = vld [vmem:[%s188 + $0x10] sm:$0xff]
        %v228 = vld [vmem:[%s188 + $0x18] sm:$0xff]
        %v229 = vpack.c.bf16 %v226, %v225
        %v230 = vpack.c.bf16 %v228, %v227
        %v231 = vld [vmem:[#allocation5] sm:$0xff]
        %v232 = vld [vmem:[#allocation5 + $0x8] sm:$0xf]
        %v233 = vld [vmem:[#allocation5 + $0xc] sm:$0xff]
        %v234 = vld [vmem:[#allocation5 + $0x14] sm:$0xf]
        %v235 = vld [vmem:[#allocation5 + $0x18] sm:$0xff]
        %v236 = vld [vmem:[#allocation5 + $0x20] sm:$0xf]
        %v237 = vld [vmem:[#allocation5 + $0x24] sm:$0xff]
        %v238 = vld [vmem:[#allocation5 + $0x2c] sm:$0xf]
        %v239 = vld [vmem:[#allocation5 + $0x30] sm:$0xff]
        %v240 = vld [vmem:[#allocation5 + $0x38] sm:$0xf]
        %v241 = vld [vmem:[#allocation5 + $0x3c] sm:$0xff]
        %v242 = vld [vmem:[#allocation5 + $0x44] sm:$0xf]
        %v243 = vld [vmem:[#allocation5 + $0x48] sm:$0xff]
        %v244 = vld [vmem:[#allocation5 + $0x50] sm:$0xf]
        %v245 = vld [vmem:[#allocation5 + $0x54] sm:$0xff]
        %v246 = vld [vmem:[#allocation5 + $0x5c] sm:$0xf]
        %v247 = vld [vmem:[#allocation7] sm:$0x7]
        %v249 = vperm.slane %v247, 0
        %v250 = vperm.slane %v247, 1
        %v251 = vperm.slane %v247, 2
        %v271 = vunpack.c.l.b16 %v231
        %v272 = vunpack.c.h.b16 %v231
        %v273 = vunpack.c.l.b16 %v232
        %v274 = vunpack.c.l.b16 %v233
        %v275 = vunpack.c.h.b16 %v233
        %v276 = vunpack.c.l.b16 %v234
        %v277 = vunpack.c.l.b16 %v235
        %v278 = vunpack.c.h.b16 %v235
        %v279 = vunpack.c.l.b16 %v236
        %v280 = vunpack.c.l.b16 %v237
        %v281 = vunpack.c.h.b16 %v237
        %v282 = vunpack.c.l.b16 %v238
        %v283 = vunpack.c.l.b16 %v239
        %v284 = vunpack.c.h.b16 %v239
        %v285 = vunpack.c.l.b16 %v240
        %v286 = vunpack.c.l.b16 %v241
        %v287 = vunpack.c.h.b16 %v241
        %v288 = vunpack.c.l.b16 %v242
        %v289 = vunpack.c.l.b16 %v243
        %v290 = vunpack.c.h.b16 %v243
        %v291 = vunpack.c.l.b16 %v244
        %v292 = vunpack.c.l.b16 %v245
        %v293 = vunpack.c.h.b16 %v245
        %v294 = vunpack.c.l.b16 %v246
        %v295 = vpack.c.b16 %v274, %v271
        %v296 = vpack.c.b16 %v275, %v272
        %v297 = vpack.c.b16 %v276, %v273
        %v298 = vpack.c.b16 %v280, %v277
        %v299 = vpack.c.b16 %v281, %v278
        %v300 = vpack.c.b16 %v282, %v279
        %v301 = vpack.c.b16 %v286, %v283
        %v302 = vpack.c.b16 %v287, %v284
        %v303 = vpack.c.b16 %v288, %v285
        %v304 = vpack.c.b16 %v292, %v289
        %v305 = vpack.c.b16 %v293, %v290
        %v306 = vpack.c.b16 %v294, %v291
        %vm319 = vcmask 523264
        %v321 = vsel %vm319, %v229, 0
        %v324 = vsel %vm319, %v230, 0
        %326 = vmatpush.bf16.msra.mxu0 0
        %327 = vmatpush.bf16.msra.mxu0 0
        %328 = vmatpush.bf16.msra.mxu0 0
        %329 = vmatpush.bf16.msra.mxu0 0
        %330 = vmatpush.bf16.msra.mxu0 %v304
        %331 = vmatpush.bf16.msra.mxu0 %v301
        %332 = vmatpush.bf16.msra.mxu0 %v298
        %333 = vmatpush.bf16.msra.mxu0 %v295
        %334 = vmatmul.bf16.gmra.mxu0 %v321
        %v335 = vpop.f32.mrf.mxu0
        %v336 = vadd.f32 %v249, %v335
        %v337 = vpop.f32.mrf.mxu0
        %v338 = vadd.f32 %v249, %v337
        %339 = vmatmul.bf16.gmra.mxu0 %v324
        %v340 = vpop.f32.mrf.mxu0
        %v341 = vadd.f32 %v249, %v340
        %v342 = vpop.f32.mrf.mxu0
        %v343 = vadd.f32 %v249, %v342
        %344 = vdwg.mxu0
        %345 = vmatpush.bf16.msra.mxu0 0
        %346 = vmatpush.bf16.msra.mxu0 0
        %347 = vmatpush.bf16.msra.mxu0 0
        %348 = vmatpush.bf16.msra.mxu0 0
        %349 = vmatpush.bf16.msra.mxu0 %v305
        %350 = vmatpush.bf16.msra.mxu0 %v302
        %351 = vmatpush.bf16.msra.mxu0 %v299
        %352 = vmatpush.bf16.msra.mxu0 %v296
        %353 = vmatmul.bf16.gmra.mxu0 %v321
        %v354 = vpop.f32.mrf.mxu0
        %v355 = vadd.f32 %v250, %v354
        %v356 = vpop.f32.mrf.mxu0
        %v357 = vadd.f32 %v250, %v356
        %358 = vmatmul.bf16.gmra.mxu0 %v324
        %v359 = vpop.f32.mrf.mxu0
        %v360 = vadd.f32 %v250, %v359
        %v361 = vpop.f32.mrf.mxu0
        %v362 = vadd.f32 %v250, %v361
        %363 = vdwg.mxu0
        %364 = vmatpush.bf16.msra.mxu0 0
        %365 = vmatpush.bf16.msra.mxu0 0
        %366 = vmatpush.bf16.msra.mxu0 0
        %367 = vmatpush.bf16.msra.mxu0 0
        %368 = vmatpush.bf16.msra.mxu0 %v306
        %369 = vmatpush.bf16.msra.mxu0 %v303
        %370 = vmatpush.bf16.msra.mxu0 %v300
        %371 = vmatpush.bf16.msra.mxu0 %v297
        %372 = vmatmul.bf16.gmra.mxu0 %v321
        %v373 = vpop.f32.mrf.mxu0
        %v374 = vadd.f32 %v251, %v373
        %v375 = vpop.f32.mrf.mxu0
        %v376 = vadd.f32 %v251, %v375
        %377 = vmatmul.bf16.gmra.mxu0 %v324
        %v378 = vpop.f32.mrf.mxu0
        %v379 = vadd.f32 %v251, %v378
        %v380 = vpop.f32.mrf.mxu0
        %v381 = vadd.f32 %v251, %v380
        %382 = vdwg.mxu0
        %v383 = vpack.c.bf16 %v336, %v336
        %v384 = vpack.c.bf16 %v338, %v338
        %v385 = vpack.c.bf16 %v341, %v341
        %v386 = vpack.c.bf16 %v343, %v343
        %v387 = vpack.c.bf16 %v355, %v355
        %v388 = vpack.c.bf16 %v357, %v357
        %v389 = vpack.c.bf16 %v360, %v360
        %v390 = vpack.c.bf16 %v362, %v362
        %v391 = vpack.c.bf16 %v374, %v374
        %v392 = vpack.c.bf16 %v376, %v376
        %v393 = vpack.c.bf16 %v379, %v379
        %v394 = vpack.c.bf16 %v381, %v381
        %395 = vmatpush.bf16.xpose.msra.mxu0 0
        %396 = vmatpush.bf16.xpose.msra.mxu0 0
        %397 = vmatpush.bf16.xpose.msra.mxu0 0
        %398 = vmatpush.bf16.xpose.msra.mxu0 0
        %399 = vmatpush.bf16.xpose.msra.mxu0 0
        %400 = vmatpush.bf16.xpose.msra.mxu0 0
        %401 = vmatpush.bf16.xpose.msra.mxu0 0
        %402 = vmatpush.bf16.xpose.msra.mxu0 %v387
        %403 = vmatmul.bf16.gmra.mxu0 %v383
        %v404 = vpop.f32.mrf.mxu0
        %v405 = vadd.f32 0.0, %v404
        %v406 = vpop.f32.mrf.mxu0
        %407 = vdwg.mxu0
        %408 = vmatpush.bf16.xpose.msra.mxu0 0
        %409 = vmatpush.bf16.xpose.msra.mxu0 0
        %410 = vmatpush.bf16.xpose.msra.mxu0 0
        %411 = vmatpush.bf16.xpose.msra.mxu0 0
        %412 = vmatpush.bf16.xpose.msra.mxu0 0
        %413 = vmatpush.bf16.xpose.msra.mxu0 0
        %414 = vmatpush.bf16.xpose.msra.mxu0 0
        %415 = vmatpush.bf16.xpose.msra.mxu0 %v388
        %416 = vmatmul.bf16.gmra.mxu0 %v384
        %v417 = vpop.f32.mrf.mxu0
        %v418 = vadd.f32 0.0, %v417
        %v419 = vpop.f32.mrf.mxu0
        %420 = vdwg.mxu0
        %421 = vmatpush.bf16.xpose.msra.mxu0 0
        %422 = vmatpush.bf16.xpose.msra.mxu0 0
        %423 = vmatpush.bf16.xpose.msra.mxu0 0
        %424 = vmatpush.bf16.xpose.msra.mxu0 0
        %425 = vmatpush.bf16.xpose.msra.mxu0 0
        %426 = vmatpush.bf16.xpose.msra.mxu0 0
        %427 = vmatpush.bf16.xpose.msra.mxu0 0
        %428 = vmatpush.bf16.xpose.msra.mxu0 %v389
        %429 = vmatmul.bf16.gmra.mxu0 %v385
        %v430 = vpop.f32.mrf.mxu0
        %v431 = vadd.f32 0.0, %v430
        %v432 = vpop.f32.mrf.mxu0
        %433 = vdwg.mxu0
        %434 = vmatpush.bf16.xpose.msra.mxu0 0
        %435 = vmatpush.bf16.xpose.msra.mxu0 0
        %436 = vmatpush.bf16.xpose.msra.mxu0 0
        %437 = vmatpush.bf16.xpose.msra.mxu0 0
        %438 = vmatpush.bf16.xpose.msra.mxu0 0
        %439 = vmatpush.bf16.xpose.msra.mxu0 0
        %440 = vmatpush.bf16.xpose.msra.mxu0 0
        %441 = vmatpush.bf16.xpose.msra.mxu0 %v390
        %442 = vmatmul.bf16.gmra.mxu0 %v386
        %v443 = vpop.f32.mrf.mxu0
        %v444 = vadd.f32 0.0, %v443
        %v445 = vpop.f32.mrf.mxu0
        %446 = vdwg.mxu0
        %vm447 = vcmask 64512
        %v448 = vsel %vm447, %v405, -inf
        %449 = vmax.xlane.f32.xlu0 %v448
        %v450 = vpop.xlane.xlu0 %449
        %v451 = vsel %vm447, %v418, -inf
        %452 = vmax.xlane.f32.xlu0 %v451
        %v453 = vpop.xlane.xlu0 %452
        %v454 = vsel %vm447, %v431, -inf
        %455 = vmax.xlane.f32.xlu0 %v454
        %v456 = vpop.xlane.xlu0 %455
        %v457 = vsel %vm447, %v444, -inf
        %458 = vmax.xlane.f32.xlu0 %v457
        %v459 = vpop.xlane.xlu0 %458
        %v460 = vsub.f32 %v405, %v450
        %v461 = vsub.f32 %v418, %v453
        %v462 = vsub.f32 %v431, %v456
        %v463 = vsub.f32 %v444, %v459
        %v464 = vmul.f32 %v460, 1.442695
        %v465 = vpow.pop %v464
        %v466 = vmul.f32 %v461, 1.442695
        %v467 = vpow.pop %v466
        %v468 = vmul.f32 %v462, 1.442695
        %v469 = vpow.pop %v468
        %v470 = vmul.f32 %v463, 1.442695
        %v471 = vpow.pop %v470
        %v472 = vsel %vm447, %v465, 0.0
        %473 = vadd.xlane.f32.xlu0 %v472
        %v474 = vpop.xlane.xlu0 %473
        %v475 = vsel %vm447, %v467, 0.0
        %476 = vadd.xlane.f32.xlu0 %v475
        %v477 = vpop.xlane.xlu0 %476
        %v478 = vsel %vm447, %v469, 0.0
        %479 = vadd.xlane.f32.xlu0 %v478
        %v480 = vpop.xlane.xlu0 %479
        %v481 = vsel %vm447, %v471, 0.0
        %482 = vadd.xlane.f32.xlu0 %v481
        %v483 = vpop.xlane.xlu0 %482
        %v484 = vpack.c.bf16 %v465, %v465
        %v485 = vpack.c.bf16 %v467, %v467
        %v486 = vpack.c.bf16 %v469, %v469
        %v487 = vpack.c.bf16 %v471, %v471
        %v489 = vsel %vm447, %v484, 0
        %vm491 = vcmask 1043456
        %v493 = vsel %vm491, %v391, 0
        %495 = vmatpush.bf16.msra.mxu0 0
        %496 = vmatpush.bf16.msra.mxu0 0
        %497 = vmatpush.bf16.msra.mxu0 0
        %498 = vmatpush.bf16.msra.mxu0 0
        %499 = vmatpush.bf16.msra.mxu0 0
        %500 = vmatpush.bf16.msra.mxu0 0
        %501 = vmatpush.bf16.msra.mxu0 0
        %502 = vmatpush.bf16.msra.mxu0 %v493
        %503 = vmatmul.bf16.gmra.mxu0 %v489
        %v504 = vpop.f32.mrf.mxu0
        %v505 = vadd.f32 0.0, %v504
        %v506 = vpop.f32.mrf.mxu0
        %507 = vdwg.mxu0
        %v509 = vsel %vm447, %v485, 0
        %v512 = vsel %vm491, %v392, 0
        %514 = vmatpush.bf16.msra.mxu0 0
        %515 = vmatpush.bf16.msra.mxu0 0
        %516 = vmatpush.bf16.msra.mxu0 0
        %517 = vmatpush.bf16.msra.mxu0 0
        %518 = vmatpush.bf16.msra.mxu0 0
        %519 = vmatpush.bf16.msra.mxu0 0
        %520 = vmatpush.bf16.msra.mxu0 0
        %521 = vmatpush.bf16.msra.mxu0 %v512
        %522 = vmatmul.bf16.gmra.mxu0 %v509
        %v523 = vpop.f32.mrf.mxu0
        %v524 = vadd.f32 0.0, %v523
        %v525 = vpop.f32.mrf.mxu0
        %526 = vdwg.mxu0
        %v528 = vsel %vm447, %v486, 0
        %v531 = vsel %vm491, %v393, 0
        %533 = vmatpush.bf16.msra.mxu0 0
        %534 = vmatpush.bf16.msra.mxu0 0
        %535 = vmatpush.bf16.msra.mxu0 0
        %536 = vmatpush.bf16.msra.mxu0 0
        %537 = vmatpush.bf16.msra.mxu0 0
        %538 = vmatpush.bf16.msra.mxu0 0
        %539 = vmatpush.bf16.msra.mxu0 0
        %540 = vmatpush.bf16.msra.mxu0 %v531
        %541 = vmatmul.bf16.gmra.mxu0 %v528
        %v542 = vpop.f32.mrf.mxu0
        %v543 = vadd.f32 0.0, %v542
        %v544 = vpop.f32.mrf.mxu0
        %545 = vdwg.mxu0
        %v547 = vsel %vm447, %v487, 0
        %v550 = vsel %vm491, %v394, 0
        %552 = vmatpush.bf16.msra.mxu0 0
        %553 = vmatpush.bf16.msra.mxu0 0
        %554 = vmatpush.bf16.msra.mxu0 0
        %555 = vmatpush.bf16.msra.mxu0 0
        %556 = vmatpush.bf16.msra.mxu0 0
        %557 = vmatpush.bf16.msra.mxu0 0
        %558 = vmatpush.bf16.msra.mxu0 0
        %559 = vmatpush.bf16.msra.mxu0 %v550
        %560 = vmatmul.bf16.gmra.mxu0 %v547
        %v561 = vpop.f32.mrf.mxu0
        %v562 = vadd.f32 0.0, %v561
        %v563 = vpop.f32.mrf.mxu0
        %564 = vdwg.mxu0
        %v565 = vrcp.pop %v474
        %v566 = vmul.f32 %v474, %v565
        %v567 = vsub.f32 1.0, %v566
        %v568 = vmul.f32 %v565, %v567
        %v569 = vadd.f32 %v565, %v568
        %vm570 = vweird.f32 %v474
        %vm571 = vweird.f32 %v565
        %vm572 = vmor %vm570, %vm571
        %v573 = vsel %vm572, %v565, %v569
        %v574 = vand.u32 2147483647, %v474
        %vm575 = vcmp.eq.f32.partialorder %v574, 8.507059e+37
        %v576 = vand.u32 %v474, 2147483648
        %v577 = vor.u32 1.1754944e-38, %v576
        %v578 = vsel %vm575, %v577, %v573
        %v579 = vrcp.pop %v477
        %v580 = vmul.f32 %v477, %v579
        %v581 = vsub.f32 1.0, %v580
        %v582 = vmul.f32 %v579, %v581
        %v583 = vadd.f32 %v579, %v582
        %vm584 = vweird.f32 %v477
        %vm585 = vweird.f32 %v579
        %vm586 = vmor %vm584, %vm585
        %v587 = vsel %vm586, %v579, %v583
        %v588 = vand.u32 2147483647, %v477
        %vm589 = vcmp.eq.f32.partialorder %v588, 8.507059e+37
        %v590 = vand.u32 %v477, 2147483648
        %v591 = vor.u32 1.1754944e-38, %v590
        %v592 = vsel %vm589, %v591, %v587
        %v593 = vrcp.pop %v480
        %v594 = vmul.f32 %v480, %v593
        %v595 = vsub.f32 1.0, %v594
        %v596 = vmul.f32 %v593, %v595
        %v597 = vadd.f32 %v593, %v596
        %vm598 = vweird.f32 %v480
        %vm599 = vweird.f32 %v593
        %vm600 = vmor %vm598, %vm599
        %v601 = vsel %vm600, %v593, %v597
        %v602 = vand.u32 2147483647, %v480
        %vm603 = vcmp.eq.f32.partialorder %v602, 8.507059e+37
        %v604 = vand.u32 %v480, 2147483648
        %v605 = vor.u32 1.1754944e-38, %v604
        %v606 = vsel %vm603, %v605, %v601
        %v607 = vrcp.pop %v483
        %v608 = vmul.f32 %v483, %v607
        %v609 = vsub.f32 1.0, %v608
        %v610 = vmul.f32 %v607, %v609
        %v611 = vadd.f32 %v607, %v610
        %vm612 = vweird.f32 %v483
        %vm613 = vweird.f32 %v607
        %vm614 = vmor %vm612, %vm613
        %v615 = vsel %vm614, %v607, %v611
        %v616 = vand.u32 2147483647, %v483
        %vm617 = vcmp.eq.f32.partialorder %v616, 8.507059e+37
        %v618 = vand.u32 %v483, 2147483648
        %v619 = vor.u32 1.1754944e-38, %v618
        %v620 = vsel %vm617, %v619, %v615
        %v621 = vmul.f32 %v505, %v578
        %v622 = vmul.f32 %v524, %v592
        %v623 = vmul.f32 %v543, %v606
        %v624 = vmul.f32 %v562, %v620
        %625 = vst.msk [vmem:[%s221] sm:$0xff] %vm319, %v621
        %626 = vst.msk [vmem:[%s221 + $0x8] sm:$0xff] %vm319, %v622
        %627 = vst.msk [vmem:[%s221 + $0x10] sm:$0xff] %vm319, %v623
        %628 = vst.msk [vmem:[%s221 + $0x18] sm:$0xff] %vm319, %v624
        %s629 = sand.u32 %s97, 1
        %s630 = scalar_lea.sflag [#allocation4], %s629
        %s631 = sand.u32 %s97, 1
        %s632 = smul.addr %s631, 32
        %s633 = scalar_lea.vmem [#allocation8], %s632
        // Predicated region
        $region45: #{tpu_custom_call.1} parent=31 // pred_check
          %p634 = pneg %p107
        $region46: #{tpu_custom_call.1} parent=31 // pred_check_branch
          %636 = sbr.rel (%p634) target = $region48
        $region47: #{tpu_custom_call.1} parent=31 // pred_region
          %s637 = smul.u32 4, %s21
          %639 = vsyncadd %s630, 0
          %s640 = smul.addr %s637, 8
          %s641 = scalar_lea.hbm %s3, %s640
          %s642 = sshll.u32 %s633, 4
          %s643 = int_to_ptr.vmem [resolvable:$true] %s642
          %s644 = sshll.u32 %s641, 4
          %s645 = int_to_ptr.hbm [resolvable:$true] %s644
          %650 = dma.vmem_to_hbm [thread:$0]  %s643, 512, %s645, %s630, 128, 128, 8
        $region48: #{tpu_custom_call.1} parent=31 // pred_fallthru
          _
      $region32: #{tpu_custom_call.1} parent=5 // pred_fallthru
        _
      %p651 = scmp.le.s32.totalorder 2, %s16
      // Predicated region
      $region49: #{tpu_custom_call.1} parent=5 // pred_check
        %p652 = pneg %p651
      $region50: #{tpu_custom_call.1} parent=5 // pred_check_branch
        %654 = sbr.rel (%p652) target = $region52
      $region51: #{tpu_custom_call.1} parent=5 // pred_region
        %s655 = ssub.s32 %s16, 2
        // Predicated region
        $region53: #{tpu_custom_call.1} parent=51 // pred_check
          %p656 = pneg %p113
        $region54: #{tpu_custom_call.1} parent=51 // pred_check_branch
          %658 = sbr.rel (%p656) target = $region56
        $region55: #{tpu_custom_call.1} parent=51 // pred_region
          %s659 = sand.u32 %s98, 1
          %s660 = scalar_lea.sflag [#allocation4], %s659
          %s661 = sand.u32 %s98, 1
          %s662 = smul.addr %s661, 32
          %s663 = scalar_lea.vmem [#allocation8], %s662
          %665 = dma.done %s660, 512
        $region56: #{tpu_custom_call.1} parent=51 // pred_fallthru
          _
      $region52: #{tpu_custom_call.1} parent=5 // pred_fallthru
        _
    $region6: #{tpu_custom_call.1} parent=1 // loop_footer
      %s20 = sadd.s32 1, %s16
    $region7: #{tpu_custom_call.1} parent=1 // loop_footer_branch
      %15 = sbr.rel target = $region3
    $region8: #{tpu_custom_call.1} parent=1 // loop_exit
      _
    %666 = vsyncpa [#allocation3], 1
    %s667 = scalar_lea.sflag [#allocation3], 1
    %668 = vsyncpa %s667, 1
    %669 = vsyncpa [#allocation6], 1
    %670 = vsyncpa [#allocation4], 1
    %s671 = scalar_lea.sflag [#allocation4], 1
    %672 = vsyncpa %s671, 1

</llo_original>
